<compile_context>
chip_gen: v7x
topology: tpu7x:2x2x1
jax: 0.10.0
libtpu: 0.0.40
codegen_flags: <defaults>
</compile_context>

<pallas_src>
import jax
import jax.numpy as jnp
from jax import lax
from jax.experimental import pallas as pl
from jax.experimental.pallas import tpu as pltpu


def corrloss_kernel(x_ref, t_ref, nin_ref, ntg_ref, out_ref):
    # All arrays arrive in the lane-dense (L, N) layout.
    x = x_ref[...].astype(jnp.float32)     # (L, N) logits (transposed)
    t = t_ref[...].astype(jnp.float32)     # (L, N) targets (transposed)
    L, N = x.shape

    # ---- BCEWithLogitsLoss (mean reduction), numerically stable ----
    # e = exp(-|x|) in (0, 1]; shared between softplus and sigmoid (one EUP exp/elem).
    e = jnp.exp(-jnp.abs(x))
    # softplus(-|x|) = log1p(e), computed without lax.log1p:
    #   large-e branch: plain log(1 + e); small-e branch: 3-term Taylor, abs err <= e^4/4.
    softplus = jnp.where(
        e > 1e-3,
        jnp.log(1.0 + e),
        e * (1.0 - e * (0.5 - e * (1.0 / 3.0))),
    )
    bce_elem = jnp.maximum(x, 0.0) - x * t + softplus
    bce = jnp.sum(bce_elem) * (1.0 / float(L * N))

    # ---- sigmoid, reusing e (overflow-safe) ----
    inv_1pe = 1.0 / (1.0 + e)
    sig = jnp.where(x >= 0.0, inv_1pe, e * inv_1pe)          # (L, N)

    # ---- add tiny uniform noise in [-1e-6, 1e-6] (already (L, N)) ----
    inp = sig + nin_ref[...]                                  # (L, N)
    tgt = t + ntg_ref[...]                                    # (L, N)

    # ---- fused correlation matrices: one (2L, N) x (N, 2L) MXU pass ----
    c_inp = inp - jnp.mean(inp, axis=1, keepdims=True)
    c_tgt = tgt - jnp.mean(tgt, axis=1, keepdims=True)
    c_all = jnp.concatenate([c_inp, c_tgt], axis=0)           # (2L, N)
    cov_all = jnp.dot(c_all, c_all.T,
                      preferred_element_type=jnp.float32)     # (2L, 2L)
    diag_all = jnp.sum(c_all * c_all, axis=1, keepdims=True)  # (2L, 1)
    inv_d = lax.rsqrt(diag_all)                               # full precision, not approx
    corr_all = jnp.clip(cov_all * (inv_d * inv_d.T), -1.0, 1.0)

    ic = jnp.abs(corr_all[:L, :L] + 1.0)                      # input correlation block
    tc = jnp.abs(corr_all[L:, L:] + 1.0)                      # target correlation block
    diff = jnp.abs(tc - ic)

    # torch.triu(diff, diagonal=1): single pair of iotas, built once.
    ii = lax.broadcasted_iota(jnp.int32, (L, L), 0)
    jj = lax.broadcasted_iota(jnp.int32, (L, L), 1)
    diff = jnp.where(jj > ii, diff, 0.0)

    num_corr = float(L * (L - 1) / 2.0)
    corr_l = jnp.sum(diff) * (1.0 / num_corr) * 0.5

    corr_weight = 0.4
    out_ref[0, 0] = (1.0 - corr_weight) * bce + corr_weight * corr_l


def corr_loss(inputs, targets, noise_in, noise_tg):
    """inputs/targets: (N, L) f32 ; noise_*: (L, N) f32 already scaled to [-1e-6, 1e-6]."""
    # Transpose once at the XLA level so the kernel works in the lane-dense (L, N) layout.
    x_t = jnp.transpose(inputs).astype(jnp.float32)
    t_t = jnp.transpose(targets).astype(jnp.float32)
    out = pl.pallas_call(
        corrloss_kernel,
        out_shape=jax.ShapeDtypeStruct((1, 1), jnp.float32),
        in_specs=[pl.BlockSpec(memory_space=pltpu.MemorySpace.VMEM)] * 4,
        out_specs=pl.BlockSpec(memory_space=pltpu.MemorySpace.SMEM),
    )(x_t, t_t, noise_in, noise_tg)
    return out[0, 0]


if __name__ == "__main__":
    N, L = 64, 8  # batch, num_labels

    key = jax.random.PRNGKey(0)
    k_in, k_tg, k_nin, k_ntg = jax.random.split(key, 4)

    logits = jax.random.normal(k_in, (N, L), dtype=jnp.float32)
    targets = (jax.random.uniform(k_tg, (N, L)) > 0.5).astype(jnp.float32)

    # torch.rand(shape) * 2 - 1, then * 1e-6  (distribution matched; RNG stream differs)
    noise_in = (jax.random.uniform(k_nin, (L, N), dtype=jnp.float32) * 2.0 - 1.0) * 1e-6
    noise_tg = (jax.random.uniform(k_ntg, (L, N), dtype=jnp.float32) * 2.0 - 1.0) * 1e-6

    loss = corr_loss(logits, targets, noise_in, noise_tg)
    loss = jax.block_until_ready(loss)

    # quick sanity check against a pure-JAX reference
    def ref(x, t, nin, ntg):
        bce = jnp.mean(jnp.maximum(x, 0) - x * t + jnp.log1p(jnp.exp(-jnp.abs(x))))
        s = jax.nn.sigmoid(x).T + nin
        g = t.T + ntg
        ic = jnp.abs(jnp.clip(jnp.corrcoef(s), -1, 1) + 1)
        tc = jnp.abs(jnp.clip(jnp.corrcoef(g), -1, 1) + 1)
        d = jnp.triu(jnp.abs(tc - ic), k=1)
        cl = jnp.sum(d) / (x.shape[1] * (x.shape[1] - 1) / 2) / 2
        return 0.6 * bce + 0.4 * cl

    ref_val = ref(logits, targets, noise_in, noise_tg)
    assert jnp.allclose(loss, ref_val, rtol=1e-4, atol=1e-6), (loss, ref_val)

    print("KERNEL_OK")
</pallas_src>

<mosaic_0001>
module attributes {stable_mosaic.version = 11 : i64} {
  func.func @corrloss_kernel(%arg0: memref<8x64xf32, #tpu.memory_space<vmem>>, %arg1: memref<8x64xf32, #tpu.memory_space<vmem>>, %arg2: memref<8x64xf32, #tpu.memory_space<vmem>>, %arg3: memref<8x64xf32, #tpu.memory_space<vmem>>, %arg4: memref<1x1xf32, #tpu.memory_space<smem>>) attributes {dimension_semantics = [], scalar_prefetch = 0 : i64, scratch_operands = 0 : i64, tpu.core_type = #tpu.core_type<tc>} {
    %c0 = arith.constant 0 : index
    %c0_0 = arith.constant 0 : index
    %0 = vector.load %arg0[%c0, %c0_0] : memref<8x64xf32, #tpu.memory_space<vmem>>, vector<8x64xf32>
    %c0_1 = arith.constant 0 : index
    %c0_2 = arith.constant 0 : index
    %1 = vector.load %arg1[%c0_1, %c0_2] : memref<8x64xf32, #tpu.memory_space<vmem>>, vector<8x64xf32>
    %2 = math.absf %0 : vector<8x64xf32>
    %cst = arith.constant 0.000000e+00 : f32
    %3 = vector.broadcast %cst : f32 to vector<8x64xf32>
    %4 = arith.subf %3, %2 : vector<8x64xf32>
    %5 = math.exp %4 : vector<8x64xf32>
    %cst_3 = arith.constant 1.000000e-03 : f32
    %6 = vector.broadcast %cst_3 : f32 to vector<8x64xf32>
    %7 = arith.cmpf ogt, %5, %6 : vector<8x64xf32>
    %cst_4 = arith.constant 1.000000e+00 : f32
    %8 = vector.broadcast %cst_4 : f32 to vector<8x64xf32>
    %9 = arith.addf %8, %5 : vector<8x64xf32>
    %10 = math.log %9 : vector<8x64xf32>
    %cst_5 = arith.constant 0.333333343 : f32
    %11 = vector.broadcast %cst_5 : f32 to vector<8x64xf32>
    %12 = arith.mulf %5, %11 : vector<8x64xf32>
    %cst_6 = arith.constant 5.000000e-01 : f32
    %13 = vector.broadcast %cst_6 : f32 to vector<8x64xf32>
    %14 = arith.subf %13, %12 : vector<8x64xf32>
    %15 = arith.mulf %5, %14 : vector<8x64xf32>
    %cst_7 = arith.constant 1.000000e+00 : f32
    %16 = vector.broadcast %cst_7 : f32 to vector<8x64xf32>
    %17 = arith.subf %16, %15 : vector<8x64xf32>
    %18 = arith.mulf %5, %17 : vector<8x64xf32>
    %19 = arith.select %7, %10, %18 : vector<8x64xi1>, vector<8x64xf32>
    %cst_8 = arith.constant 0.000000e+00 : f32
    %20 = vector.broadcast %cst_8 : f32 to vector<8x64xf32>
    %21 = arith.maximumf %0, %20 : vector<8x64xf32>
    %22 = arith.mulf %0, %1 : vector<8x64xf32>
    %23 = arith.subf %21, %22 : vector<8x64xf32>
    %24 = arith.addf %23, %19 : vector<8x64xf32>
    %25 = vector.shape_cast %24 : vector<8x64xf32> to vector<1x8x64xf32>
    %cst_9 = arith.constant dense<0.000000e+00> : vector<1xf32>
    %26 = vector.multi_reduction <add>, %25, %cst_9 [1, 2] : vector<1x8x64xf32> to vector<1xf32>
    %27 = vector.shape_cast %26 : vector<1xf32> to vector<1x1x1xf32>
    %28 = vector.extract %27[0, 0, 0] : f32 from vector<1x1x1xf32>
    %cst_10 = arith.constant 0.001953125 : f32
    %29 = arith.mulf %28, %cst_10 : f32
    %cst_11 = arith.constant 1.000000e+00 : f32
    %30 = vector.broadcast %cst_11 : f32 to vector<8x64xf32>
    %31 = arith.addf %30, %5 : vector<8x64xf32>
    %cst_12 = arith.constant 1.000000e+00 : f32
    %32 = vector.broadcast %cst_12 : f32 to vector<8x64xf32>
    %33 = arith.divf %32, %31 : vector<8x64xf32>
    %cst_13 = arith.constant 0.000000e+00 : f32
    %34 = vector.broadcast %cst_13 : f32 to vector<8x64xf32>
    %35 = arith.cmpf oge, %0, %34 : vector<8x64xf32>
    %36 = arith.mulf %5, %33 : vector<8x64xf32>
    %37 = arith.select %35, %33, %36 : vector<8x64xi1>, vector<8x64xf32>
    %c0_14 = arith.constant 0 : index
    %c0_15 = arith.constant 0 : index
    %38 = vector.load %arg2[%c0_14, %c0_15] : memref<8x64xf32, #tpu.memory_space<vmem>>, vector<8x64xf32>
    %39 = arith.addf %37, %38 : vector<8x64xf32>
    %c0_16 = arith.constant 0 : index
    %c0_17 = arith.constant 0 : index
    %40 = vector.load %arg3[%c0_16, %c0_17] : memref<8x64xf32, #tpu.memory_space<vmem>>, vector<8x64xf32>
    %41 = arith.addf %1, %40 : vector<8x64xf32>
    %cst_18 = arith.constant dense<0.000000e+00> : vector<8xf32>
    %42 = vector.multi_reduction <add>, %39, %cst_18 [1] : vector<8x64xf32> to vector<8xf32>
    %43 = vector.shape_cast %42 : vector<8xf32> to vector<8x1xf32>
    %cst_19 = arith.constant 6.400000e+01 : f32
    %44 = vector.broadcast %cst_19 : f32 to vector<8x1xf32>
    %45 = arith.divf %43, %44 : vector<8x1xf32>
    %46 = vector.broadcast %45 : vector<8x1xf32> to vector<8x64xf32>
    %47 = arith.subf %39, %46 : vector<8x64xf32>
    %cst_20 = arith.constant dense<0.000000e+00> : vector<8xf32>
    %48 = vector.multi_reduction <add>, %41, %cst_20 [1] : vector<8x64xf32> to vector<8xf32>
    %49 = vector.shape_cast %48 : vector<8xf32> to vector<8x1xf32>
    %cst_21 = arith.constant 6.400000e+01 : f32
    %50 = vector.broadcast %cst_21 : f32 to vector<8x1xf32>
    %51 = arith.divf %49, %50 : vector<8x1xf32>
    %52 = vector.broadcast %51 : vector<8x1xf32> to vector<8x64xf32>
    %53 = arith.subf %41, %52 : vector<8x64xf32>
    %54 = tpu.concatenate %47, %53 in 0 : vector<8x64xf32>, vector<8x64xf32> -> vector<16x64xf32>
    %55 = tpu.transpose %54, [1, 0] : vector<16x64xf32> -> vector<64x16xf32>
    %cst_22 = arith.constant dense<0.000000e+00> : vector<16x16xf32>
    %56 = tpu.matmul %54, %55, %cst_22 {dimension_numbers = #tpu.dot_dimension_numbers<[1], [0], [0], [1], [0, 0, 1, 1], [], []>} : vector<16x64xf32>, vector<64x16xf32>, vector<16x16xf32> -> vector<16x16xf32>
    %57 = arith.mulf %54, %54 : vector<16x64xf32>
    %cst_23 = arith.constant dense<0.000000e+00> : vector<16xf32>
    %58 = vector.multi_reduction <add>, %57, %cst_23 [1] : vector<16x64xf32> to vector<16xf32>
    %59 = vector.shape_cast %58 : vector<16xf32> to vector<16x1xf32>
    %60 = math.rsqrt %59 : vector<16x1xf32>
    %61 = tpu.transpose %60, [1, 0] : vector<16x1xf32> -> vector<1x16xf32>
    %62 = vector.broadcast %60 : vector<16x1xf32> to vector<16x16xf32>
    %63 = vector.broadcast %61 : vector<1x16xf32> to vector<16x16xf32>
    %64 = arith.mulf %62, %63 : vector<16x16xf32>
    %65 = arith.mulf %56, %64 : vector<16x16xf32>
    %cst_24 = arith.constant -1.000000e+00 : f32
    %cst_25 = arith.constant 1.000000e+00 : f32
    %66 = vector.broadcast %cst_24 : f32 to vector<16x16xf32>
    %67 = arith.maximumf %66, %65 : vector<16x16xf32>
    %68 = vector.broadcast %cst_25 : f32 to vector<16x16xf32>
    %69 = arith.minimumf %68, %67 : vector<16x16xf32>
    %70 = vector.extract_strided_slice %69 {offsets = [0, 0], sizes = [8, 8], strides = [1, 1]} : vector<16x16xf32> to vector<8x8xf32>
    %cst_26 = arith.constant 1.000000e+00 : f32
    %71 = vector.broadcast %cst_26 : f32 to vector<8x8xf32>
    %72 = arith.addf %70, %71 : vector<8x8xf32>
    %73 = math.absf %72 : vector<8x8xf32>
    %74 = vector.extract_strided_slice %69 {offsets = [8, 8], sizes = [8, 8], strides = [1, 1]} : vector<16x16xf32> to vector<8x8xf32>
    %cst_27 = arith.constant 1.000000e+00 : f32
    %75 = vector.broadcast %cst_27 : f32 to vector<8x8xf32>
    %76 = arith.addf %74, %75 : vector<8x8xf32>
    %77 = math.absf %76 : vector<8x8xf32>
    %78 = arith.subf %77, %73 : vector<8x8xf32>
    %79 = math.absf %78 : vector<8x8xf32>
    %80 = tpu.iota {dimensions = array<i32: 0>} : vector<8x8xi32>
    %81 = tpu.iota {dimensions = array<i32: 1>} : vector<8x8xi32>
    %82 = arith.cmpi sgt, %81, %80 : vector<8x8xi32>
    %cst_28 = arith.constant 0.000000e+00 : f32
    %83 = vector.broadcast %cst_28 : f32 to vector<8x8xf32>
    %84 = arith.select %82, %79, %83 : vector<8x8xi1>, vector<8x8xf32>
    %85 = vector.shape_cast %84 : vector<8x8xf32> to vector<1x8x8xf32>
    %cst_29 = arith.constant dense<0.000000e+00> : vector<1xf32>
    %86 = vector.multi_reduction <add>, %85, %cst_29 [1, 2] : vector<1x8x8xf32> to vector<1xf32>
    %87 = vector.shape_cast %86 : vector<1xf32> to vector<1x1x1xf32>
    %88 = vector.extract %87[0, 0, 0] : f32 from vector<1x1x1xf32>
    %cst_30 = arith.constant 0.0357142873 : f32
    %89 = arith.mulf %88, %cst_30 : f32
    %cst_31 = arith.constant 5.000000e-01 : f32
    %90 = arith.mulf %89, %cst_31 : f32
    %cst_32 = arith.constant 6.000000e-01 : f32
    %91 = arith.mulf %cst_32, %29 : f32
    %cst_33 = arith.constant 4.000000e-01 : f32
    %92 = arith.mulf %cst_33, %90 : f32
    %93 = arith.addf %91, %92 : f32
    %c0_34 = arith.constant 0 : index
    %c0_35 = arith.constant 0 : index
    %94 = memref.load %arg4[%c0_34, %c0_35] : memref<1x1xf32, #tpu.memory_space<smem>>
    memref.store %93, %arg4[%c0_34, %c0_35] : memref<1x1xf32, #tpu.memory_space<smem>>
    return
  }
}

</mosaic_0001>

<llo_original>
// kernel: tpu_custom_call.1
$region0: #{tpu_custom_call.1}
  #allocation0 [shape = 'u32[]', space=smem, size = 0x4, offset = 0x4, fixed_abs, tag = 'smem constant byte address 0x4 - core index']
  #allocation1 [shape = 'u32[144,128]{1,0:T(1,128)}', space=vmem, size = 0x12000, scoped, tag = 'internal scratch']
  %s0 = inlined_call_operand.hbm [shape: f32[8,64], index: 0, kind: input, shape index: {}]
  %s1 = inlined_call_operand.hbm [shape: f32[8,64], index: 1, kind: input, shape index: {}]
  %s2 = inlined_call_operand.hbm [shape: f32[8,64], index: 2, kind: input, shape index: {}]
  %s3 = inlined_call_operand.vmem [shape: f32[8,64], index: 3, kind: input, shape index: {}]
  %s4 = inlined_call_operand.hbm [shape: f32[1,1], index: 4, kind: output, shape index: {}]
  %s5 = sld [smem:[#allocation0]]
  $region38: #{tpu_custom_call.1} parent=0
    _
  %s7 = ssub.s32 1, %s5
  %s8 = scalar_select 0, %s7, %s5
  $region1: #{tpu_custom_call.1} parent=0
    #allocation2 [shape = 'u8[4096]{0}', space=vmem, size = 0x1000, scoped, tag = 'input window, operand 0, single buffered']
    #allocation3 [shape = 's32[1]{0}', space=sflag, size = 0x4, scoped, tag = 'scoped memory for tpu_custom_call.1']
    #allocation4 [shape = 's32[1]{0}', space=sflag, size = 0x4, scoped, tag = 'scoped memory for tpu_custom_call.1']
    #allocation5 [shape = 'u8[4096]{0}', space=vmem, size = 0x1000, scoped, tag = 'input window, operand 1, single buffered']
    #allocation6 [shape = 's32[1]{0}', space=sflag, size = 0x4, scoped, tag = 'scoped memory for tpu_custom_call.1']
    #allocation7 [shape = 'u8[4096]{0}', space=vmem, size = 0x1000, scoped, tag = 'input window, operand 2, single buffered']
    #allocation8 [shape = 'u8[512]{0}', space=smem, size = 0x200, scoped, tag = 'output window, operand 0, single buffered']
    %9 = vsyncpa [#allocation3], 0
    %10 = vsyncpa [#allocation6], 0
    %11 = vsyncpa [#allocation4], 0
    // Predicated region
    $region2: #{tpu_custom_call.1} parent=1 // pred_check
      _
    $region3: #{tpu_custom_call.1} parent=1 // pred_check_branch
      %13 = sbr.rel (0) target = $region5
    $region4: #{tpu_custom_call.1} parent=1 // pred_region
      %s15 = ssub.s32 128, 128
      %16 = vsyncadd [#allocation3], %s15
      %s18 = sshll.u32 [#allocation2], 4
      %s19 = int_to_ptr.vmem [resolvable:$true] %s18
      %21 = dma.hbm_to_vmem [thread:$0]  %s0, 128, %s19, [#allocation3]
    $region5: #{tpu_custom_call.1} parent=1 // pred_fallthru
      _
    // Predicated region
    $region6: #{tpu_custom_call.1} parent=1 // pred_check
      _
    $region7: #{tpu_custom_call.1} parent=1 // pred_check_branch
      %23 = sbr.rel (0) target = $region9
    $region8: #{tpu_custom_call.1} parent=1 // pred_region
      %s25 = ssub.s32 128, 128
      %26 = vsyncadd [#allocation6], %s25
      %s28 = sshll.u32 [#allocation5], 4
      %s29 = int_to_ptr.vmem [resolvable:$true] %s28
      %31 = dma.hbm_to_vmem [thread:$0]  %s1, 128, %s29, [#allocation6]
    $region9: #{tpu_custom_call.1} parent=1 // pred_fallthru
      _
    // Predicated region
    $region10: #{tpu_custom_call.1} parent=1 // pred_check
      _
    $region11: #{tpu_custom_call.1} parent=1 // pred_check_branch
      %33 = sbr.rel (0) target = $region13
    $region12: #{tpu_custom_call.1} parent=1 // pred_region
      %s35 = ssub.s32 128, 128
      %36 = vsyncadd [#allocation6], %s35
      %s38 = sshll.u32 [#allocation7], 4
      %s39 = int_to_ptr.vmem [resolvable:$true] %s38
      %41 = dma.hbm_to_vmem [thread:$0]  %s2, 128, %s39, [#allocation6]
    $region13: #{tpu_custom_call.1} parent=1 // pred_fallthru
      _
    // Predicated region
    $region14: #{tpu_custom_call.1} parent=1 // pred_check
      _
    $region15: #{tpu_custom_call.1} parent=1 // pred_check_branch
      %43 = sbr.rel (0) target = $region17
    $region16: #{tpu_custom_call.1} parent=1 // pred_region
      _
    $region17: #{tpu_custom_call.1} parent=1 // pred_fallthru
      _
    // Predicated region
    $region18: #{tpu_custom_call.1} parent=1 // pred_check
      _
    $region19: #{tpu_custom_call.1} parent=1 // pred_check_branch
      %45 = sbr.rel (0) target = $region21
    $region20: #{tpu_custom_call.1} parent=1 // pred_region
      %46 = dma.done [#allocation3], 128
    $region21: #{tpu_custom_call.1} parent=1 // pred_fallthru
      _
    // Predicated region
    $region22: #{tpu_custom_call.1} parent=1 // pred_check
      _
    $region23: #{tpu_custom_call.1} parent=1 // pred_check_branch
      %48 = sbr.rel (0) target = $region25
    $region24: #{tpu_custom_call.1} parent=1 // pred_region
      %49 = dma.done [#allocation6], 128
    $region25: #{tpu_custom_call.1} parent=1 // pred_fallthru
      _
    // Predicated region
    $region26: #{tpu_custom_call.1} parent=1 // pred_check
      _
    $region27: #{tpu_custom_call.1} parent=1 // pred_check_branch
      %51 = sbr.rel (0) target = $region29
    $region28: #{tpu_custom_call.1} parent=1 // pred_region
      %52 = dma.done [#allocation6], 128
    $region29: #{tpu_custom_call.1} parent=1 // pred_fallthru
      _
    %v53 = vld [vmem:[#allocation2] sm:$0xff]
    %v54 = vld [vmem:[#allocation5] sm:$0xff]
    %v55 = vand.u32 2147483647, %v53
    %v56 = vsub.f32 0.0, %v55
    %v57 = vmul.f32 %v56, 1.442695
    %v58 = vpow.pop %v57
    %vm59 = vcmp.gt.f32.partialorder %v58, 0.001
    %v60 = vadd.f32 %v58, 1.0
    %v61 = vlog2.pop %v60
    %v62 = vmul.f32 %v61, 0.6931472
    %v63 = vmul.f32 %v58, 0.33333334
    %v64 = vsub.f32 0.5, %v63
    %v65 = vmul.f32 %v58, %v64
    %v66 = vsub.f32 1.0, %v65
    %v67 = vmul.f32 %v58, %v66
    %v68 = vsel %vm59, %v62, %v67
    %v69 = vmax.f32 %v53, 0.0
    %v70 = vmul.f32 %v53, %v54
    %v71 = vsub.f32 %v69, %v70
    %v72 = vadd.f32 %v71, %v68
    %vm73 = vcmask 523264
    %v74 = vsel %vm73, %v72, 0.0
    %75 = vadd.xlane.f32.xlu0 %v74
    %v76 = vpop.xlane.xlu0 %75
    %v77 = vrot.slane %v76, 4
    %v78 = vadd.f32 %v76, %v77
    %v79 = vrot.slane %v78, 2
    %v80 = vadd.f32 %v78, %v79
    %v81 = vrot.slane %v80, 1
    %v82 = vadd.f32 %v80, %v81
    %s83 = vtos %v82
    %s84 = smul.f32 %s83, 0.001953125
    %v85 = vrcp.pop %v60
    %v86 = vmul.f32 1.0, %v85
    %vm87 = vcmp.ge.f32.partialorder %v53, 0.0
    %v88 = vmul.f32 %v58, %v86
    %v89 = vsel %vm87, %v86, %v88
    %v90 = vld [vmem:[#allocation7] sm:$0xff]
    %v91 = vadd.f32 %v89, %v90
    %v92 = vld [vmem:[%s3] sm:$0xff]
    %v93 = vadd.f32 %v54, %v92
    %v94 = vsel %vm73, %v91, 0.0
    %95 = vadd.xlane.f32.xlu0 %v94
    %v96 = vpop.xlane.xlu0 %95
    %v97 = vrcp.pop 64.0
    %v98 = vmul.f32 %v96, %v97
    %v99 = vsub.f32 %v91, %v98
    %v100 = vsel %vm73, %v93, 0.0
    %101 = vadd.xlane.f32.xlu0 %v100
    %v102 = vpop.xlane.xlu0 %101
    %v103 = vmul.f32 %v102, %v97
    %v104 = vsub.f32 %v93, %v103
    %v106 = vsel %vm73, %v99, 0
    %v109 = vsel %vm73, %v104, 0
    %111 = vmatprep.subr.mxu0 0.0
    %112 = vmatpush1.xpose.msra.mxu0 %v106
    %113 = vmatprep.subr.mxu0 0.0
    %114 = vmatpush1.xpose.msra.mxu0 %v109
    %115 = vmatprep.subr.mxu0 0.0
    %116 = vmatpush1.xpose.msra.mxu0 0.0
    %117 = vmatprep.subr.mxu0 0.0
    %118 = vmatpush1.xpose.msra.mxu0 0.0
    %119 = vmatprep.subr.mxu0 0.0
    %120 = vmatpush1.xpose.msra.mxu0 0.0
    %121 = vmatprep.subr.mxu0 0.0
    %122 = vmatpush1.xpose.msra.mxu0 0.0
    %123 = vmatprep.subr.mxu0 0.0
    %124 = vmatpush1.xpose.msra.mxu0 0.0
    %125 = vmatprep.subr.mxu0 0.0
    %126 = vmatpush1.xpose.msra.mxu0 0.0
    %127 = vmatprep.subr.mxu0 0.0
    %128 = vmatpush1.xpose.msra.mxu0 0.0
    %129 = vmatprep.subr.mxu0 0.0
    %130 = vmatpush1.xpose.msra.mxu0 0.0
    %131 = vmatprep.subr.mxu0 0.0
    %132 = vmatpush1.xpose.msra.mxu0 0.0
    %133 = vmatprep.subr.mxu0 0.0
    %134 = vmatpush1.xpose.msra.mxu0 0.0
    %135 = vmatprep.subr.mxu0 0.0
    %136 = vmatpush1.xpose.msra.mxu0 0.0
    %137 = vmatprep.subr.mxu0 0.0
    %138 = vmatpush1.xpose.msra.mxu0 0.0
    %139 = vmatprep.subr.mxu0 0.0
    %140 = vmatpush1.xpose.msra.mxu0 0.0
    %141 = vmatprep.subr.mxu0 0.0
    %142 = vmatpush1.xpose.msra.mxu0 0.0
    %143 = vmatprep.subr.mxu0 0.0
    %144 = vmatpush1.xpose.msra.mxu0 0.0
    %145 = vmatprep.subr.mxu0 0.0
    %146 = vmatpush1.xpose.msra.mxu0 0.0
    %147 = vmatprep.subr.mxu0 0.0
    %148 = vmatpush1.xpose.msra.mxu0 0.0
    %149 = vmatprep.subr.mxu0 0.0
    %150 = vmatpush1.xpose.msra.mxu0 0.0
    %151 = vmatprep.subr.mxu0 0.0
    %152 = vmatpush1.xpose.msra.mxu0 0.0
    %153 = vmatprep.subr.mxu0 0.0
    %154 = vmatpush1.xpose.msra.mxu0 0.0
    %155 = vmatprep.subr.mxu0 0.0
    %156 = vmatpush1.xpose.msra.mxu0 0.0
    %157 = vmatprep.subr.mxu0 0.0
    %158 = vmatpush1.xpose.msra.mxu0 0.0
    %159 = vmatprep.subr.mxu0 0.0
    %160 = vmatpush1.xpose.msra.mxu0 0.0
    %161 = vmatprep.subr.mxu0 0.0
    %162 = vmatpush1.xpose.msra.mxu0 0.0
    %163 = vmatprep.subr.mxu0 0.0
    %164 = vmatpush1.xpose.msra.mxu0 0.0
    %165 = vmatprep.subr.mxu0 0.0
    %166 = vmatpush1.xpose.msra.mxu0 0.0
    %167 = vmatprep.subr.mxu0 0.0
    %168 = vmatpush1.xpose.msra.mxu0 0.0
    %169 = vmatprep.subr.mxu0 0.0
    %170 = vmatpush1.xpose.msra.mxu0 0.0
    %171 = vmatprep.subr.mxu0 0.0
    %172 = vmatpush1.xpose.msra.mxu0 0.0
    %173 = vmatprep.subr.mxu0 0.0
    %174 = vmatpush1.xpose.msra.mxu0 0.0
    %175 = vmatprep.mubr.f32.mxu0 0.0
    %176 = vmatmul.mubr.f32.gmra.mrb[0].mxu0 %v106
    %v177 = vpop.f32.mrb[0].mxu0
    %v178 = vadd.f32 0.0, %v177
    %v179 = vpop.f32.mrb[0].mxu0
    %180 = vmatprep.mubr.f32.mxu0 0.0
    %181 = vmatmul.mubr.f32.gmra.mrb[0].mxu0 %v109
    %v182 = vpop.f32.mrb[0].mxu0
    %v183 = vadd.f32 0.0, %v182
    %v184 = vpop.f32.mrb[0].mxu0
    %185 = vdwg.mxu0
    %v186 = vmul.f32 %v99, %v99
    %v187 = vmul.f32 %v104, %v104
    %v188 = vsel %vm73, %v186, 0.0
    %189 = vadd.xlane.f32.xlu0 %v188
    %v190 = vpop.xlane.xlu0 %189
    %v191 = vsel %vm73, %v187, 0.0
    %192 = vadd.xlane.f32.xlu0 %v191
    %v193 = vpop.xlane.xlu0 %192
    %v194 = vrsqrt.pop %v190
    %v195 = vrsqrt.pop %v193
    %196 = vxpose.xlu0.b32.start [1/16] %v194, 128
    %197 = vxpose.xlu0.b32.cont [2/16] %v195, 128
    %198 = vxpose.xlu0.b32.cont [3/16] 0.0, 128
    %199 = vxpose.xlu0.b32.cont [4/16] 0.0, 128
    %200 = vxpose.xlu0.b32.cont [5/16] 0.0, 128
    %201 = vxpose.xlu0.b32.cont [6/16] 0.0, 128
    %202 = vxpose.xlu0.b32.cont [7/16] 0.0, 128
    %203 = vxpose.xlu0.b32.cont [8/16] 0.0, 128
    %204 = vxpose.xlu0.b32.cont [9/16] 0.0, 128
    %205 = vxpose.xlu0.b32.cont [10/16] 0.0, 128
    %206 = vxpose.xlu0.b32.cont [11/16] 0.0, 128
    %207 = vxpose.xlu0.b32.cont [12/16] 0.0, 128
    %208 = vxpose.xlu0.b32.cont [13/16] 0.0, 128
    %209 = vxpose.xlu0.b32.cont [14/16] 0.0, 128
    %210 = vxpose.xlu0.b32.cont [15/16] 0.0, 128
    %211 = vxpose.xlu0.b32.end [16/16] 0.0, 128
    %v212 = vpop.trf.xlu0
    %v213 = vpop.trf.xlu0
    %v214 = vpop.trf.xlu0
    %v215 = vpop.trf.xlu0
    %v216 = vpop.trf.xlu0
    %v217 = vpop.trf.xlu0
    %v218 = vpop.trf.xlu0
    %v219 = vpop.trf.xlu0
    %v220 = vpop.trf.xlu0
    %v221 = vpop.trf.xlu0
    %v222 = vpop.trf.xlu0
    %v223 = vpop.trf.xlu0
    %v224 = vpop.trf.xlu0
    %v225 = vpop.trf.xlu0
    %v226 = vpop.trf.xlu0
    %v227 = vpop.trf.xlu0
    %v228 = vlaneseq
    %v229 = vshrl.u32 %v228, 7
    %v230 = vsub.s32 0, %v229
    %v231 = vrot.slane %v212, %v230
    %v232 = vmul.f32 %v194, %v231
    %v233 = vmul.f32 %v195, %v231
    %v234 = vmul.f32 %v178, %v232
    %v235 = vmul.f32 %v183, %v233
    %v236 = vmax.f32 %v234, -1.0
    %v237 = vmax.f32 %v235, -1.0
    %v238 = vmin.f32 %v236, 1.0
    %v239 = vmin.f32 %v237, 1.0
    %v240 = vadd.f32 %v238, 1.0
    %v241 = vand.u32 2147483647, %v240
    %v242 = vadd.f32 %v239, 1.0
    %v243 = vand.u32 2147483647, %v242
    %245 = vrot.lane.b32.xlu0 %v241, 8
    %v246 = vpop.permute.xlu0 %245
    %v248 = vsub.f32 %v243, %v246
    %v249 = vand.u32 2147483647, %v248
    %v250 = vlaneseq
    %v251 = vshrl.u32 %v250, 7
    %v252 = vlaneseq
    %v253 = vand.u32 %v252, 127
    %vm254 = vcmp.gt.s32.totalorder %v253, %v251
    %256 = vrot.lane.b32.xlu0 %v249, 120
    %v257 = vpop.permute.xlu0 %256
    %v259 = vsel %vm254, %v257, 0.0
    %vm260 = vcmask 64512
    %v261 = vsel %vm260, %v259, 0.0
    %262 = vadd.xlane.f32.xlu0 %v261
    %v263 = vpop.xlane.xlu0 %262
    %v264 = vrot.slane %v263, 4
    %v265 = vadd.f32 %v263, %v264
    %v266 = vrot.slane %v265, 2
    %v267 = vadd.f32 %v265, %v266
    %v268 = vrot.slane %v267, 1
    %v269 = vadd.f32 %v267, %v268
    %s270 = vtos %v269
    %s271 = smul.f32 %s270, 0.035714287
    %s272 = smul.f32 %s271, 0.5
    %s273 = smul.f32 %s84, 0.6
    %s274 = smul.f32 %s272, 0.4
    %s275 = sadd.f32 %s273, %s274
    %s276 = scalar_lea.smem [#allocation8], 0
    %277 = sst [smem:[%s276]] %s275
    // Predicated region
    $region30: #{tpu_custom_call.1} parent=1 // pred_check
      _
    $region31: #{tpu_custom_call.1} parent=1 // pred_check_branch
      %279 = sbr.rel (0) target = $region33
    $region32: #{tpu_custom_call.1} parent=1 // pred_region
      %s281 = ssub.s32 16, 16
      %282 = vsyncadd [#allocation4], %s281
      %285 = dma.smem_to_hbm [#allocation8], 16, %s4, [#allocation4]
    $region33: #{tpu_custom_call.1} parent=1 // pred_fallthru
      _
    // Predicated region
    $region34: #{tpu_custom_call.1} parent=1 // pred_check
      _
    $region35: #{tpu_custom_call.1} parent=1 // pred_check_branch
      %287 = sbr.rel (0) target = $region37
    $region36: #{tpu_custom_call.1} parent=1 // pred_region
      %288 = dma.done [#allocation4], 16
    $region37: #{tpu_custom_call.1} parent=1 // pred_fallthru
      _
    %289 = sfence
    %290 = vsyncpa [#allocation3], 1
    %291 = vsyncpa [#allocation6], 1
    %292 = vsyncpa [#allocation4], 1

</llo_original>
